<compile_context>
chip_gen: v5e
topology: v5e:2x2
jax: 0.10.0
libtpu: 0.0.40
codegen_flags: <defaults>
</compile_context>

<pallas_src>
import functools

import jax
import jax.numpy as jnp
from jax import lax
from jax.experimental import pallas as pl
from jax.experimental.pallas import tpu as pltpu


def _lowbias32(h):
    """Cheap high-quality 32-bit integer hash (vectorized, VPU-only ops)."""
    h = h ^ (h >> jnp.uint32(16))
    h = h * jnp.uint32(0x7FEB352D)
    h = h ^ (h >> jnp.uint32(15))
    h = h * jnp.uint32(0x846CA68B)
    h = h ^ (h >> jnp.uint32(16))
    return h


def _dropout_mlp_kernel(seed_ref,                       # scalar-prefetch (SMEM)
                        x_ref, w0_ref, b0_ref,
                        w1_ref, b1_ref, w2_ref, b2_ref,
                        ot_ref,
                        *, dropout_rate, activation, tile_rows, num_cols):
    x = x_ref[...].astype(jnp.float32)

    # ---- input dropout (inverted scaling, training semantics) ----
    if dropout_rate > 0.0:
        rows = lax.broadcasted_iota(jnp.int32, x.shape, 0)
        cols = lax.broadcasted_iota(jnp.int32, x.shape, 1)
        # global element index -> independent mask per batch tile
        g_rows = rows + pl.program_id(0) * tile_rows
        idx = (g_rows * num_cols + cols).astype(jnp.uint32)
        seed_mix = seed_ref[0].astype(jnp.uint32) * jnp.uint32(0x9E3779B9)
        bits = _lowbias32(idx + seed_mix)
        thresh = jnp.uint32(min(int(round(dropout_rate * 4294967296.0)), 4294967295))
        keep = bits >= thresh                       # P(keep) = 1 - p, integer compare
        scale = jnp.float32(1.0 / (1.0 - dropout_rate))
        x = jnp.where(keep, x * scale, jnp.float32(0.0))

    # ---- hidden layer 0: relu(x @ W0^T + b0)  (weights pre-transposed to [in,out])
    # TODO(synk): at large hidden widths cast x / weights to bf16 for the MXU
    # (keep f32 accumulation); irrelevant at these toy sizes.
    h = jnp.dot(x, w0_ref[...], preferred_element_type=jnp.float32) + b0_ref[...]
    h = jnp.maximum(h, 0.0)

    # ---- hidden layer 1: relu(h @ W1^T + b1) ----
    h = jnp.dot(h, w1_ref[...], preferred_element_type=jnp.float32) + b1_ref[...]
    h = jnp.maximum(h, 0.0)

    # ---- output layer, computed TRANSPOSED for a lane-dense store:
    #      y^T[o, b] = sum_k W2[o, k] * h[b, k]
    yt = lax.dot_general(w2_ref[...], h,
                         (((1,), (1,)), ((), ())),
                         preferred_element_type=jnp.float32) + b2_ref[...]

    if activation == "sigmoid":
        yt = jax.nn.sigmoid(yt)
    elif activation == "tanh":
        yt = jnp.tanh(yt)
    elif activation == "relu":
        yt = jnp.maximum(yt, 0.0)
    elif activation is not None:
        raise ValueError(f"unknown activation: {activation!r}")

    ot_ref[...] = yt.astype(ot_ref.dtype)


def prepare_params(params):
    """One-time prep from PyTorch Linear layout (W: [out,in], b: [out])."""
    return dict(
        w0=jnp.asarray(params["W0"]).T,              # [in, h0]
        b0=jnp.asarray(params["b0"]).reshape(1, -1), # [1, h0]
        w1=jnp.asarray(params["W1"]).T,              # [h0, h1]
        b1=jnp.asarray(params["b1"]).reshape(1, -1), # [1, h1]
        w2=jnp.asarray(params["W2"]),                # [O, h1] (kept; final layer runs transposed)
        b2=jnp.asarray(params["b2"]).reshape(-1, 1), # [O, 1]
    )


def _round_up(n, m):
    return (n + m - 1) // m * m


def dropout_input_mlp(x, prepared, *, dropout_rate=0.5, activation="sigmoid", seed=0):
    """x: [B, input_size] float32.  prepared: output of prepare_params()."""
    assert 0.0 <= dropout_rate < 1.0, "dropout_rate must be in [0, 1)"
    B, F = x.shape
    w0, b0 = prepared["w0"], prepared["b0"]
    w1, b1 = prepared["w1"], prepared["b1"]
    w2, b2 = prepared["w2"], prepared["b2"]
    H0, H1, O = w0.shape[1], w1.shape[1], w2.shape[0]

    # ---- batch tiling: big tiles, grid over batch, pad to a tile multiple ----
    if B <= 512:
        TB = max(8, _round_up(B, 8))
    else:
        TB = 512
    B_pad = _round_up(B, TB)
    if B_pad != B:
        x = jnp.pad(x, ((0, B_pad - B), (0, 0)))
    n_tiles = B_pad // TB

    seed_arr = jnp.asarray([seed], dtype=jnp.int32)

    kernel = functools.partial(
        _dropout_mlp_kernel,
        dropout_rate=float(dropout_rate),
        activation=activation,
        tile_rows=TB,
        num_cols=F,
    )

    def full(shape):
        return pl.BlockSpec(shape, lambda i, s: (0,) * len(shape))

    out_t = pl.pallas_call(
        kernel,
        out_shape=jax.ShapeDtypeStruct((O, B_pad), x.dtype),
        grid_spec=pltpu.PrefetchScalarGridSpec(
            num_scalar_prefetch=1,
            grid=(n_tiles,),
            in_specs=[
                pl.BlockSpec((TB, F), lambda i, s: (i, 0)),   # x, batch-tiled
                full((F, H0)),     # W0^T
                full((1, H0)),     # b0
                full((H0, H1)),    # W1^T
                full((1, H1)),     # b1
                full((O, H1)),     # W2 (torch layout, final layer runs transposed)
                full((O, 1)),      # b2 (column for lane-broadcast)
            ],
            out_specs=pl.BlockSpec((O, TB), lambda i, s: (0, i)),  # lane-dense y^T
        ),
        compiler_params=pltpu.CompilerParams(
            dimension_semantics=("parallel",),   # batch tiles independent -> megacore on v7x
        ),
    )(seed_arr, x, w0, b0, w1, b1, w2, b2)

    return out_t[:, :B].T                        # back to [B, O]


def _init_params(key, input_size, hidden_sizes, output_size):
    """Deterministic init matching nn.Linear shapes (W: [out, in], b: [out])."""
    sizes = [input_size] + list(hidden_sizes) + [output_size]
    params = {}
    for i in range(len(sizes) - 1):
        fan_in, fan_out = sizes[i], sizes[i + 1]
        key, k_w, k_b = jax.random.split(key, 3)
        bound = 1.0 / (fan_in ** 0.5)
        params[f"W{i}"] = jax.random.uniform(
            k_w, (fan_out, fan_in), jnp.float32, -bound, bound)
        params[f"b{i}"] = jax.random.uniform(
            k_b, (fan_out,), jnp.float32, -bound, bound)
    return params


def _ref_mlp_no_dropout(x, params, activation):
    h = jnp.maximum(x @ params["W0"].T + params["b0"], 0.0)
    h = jnp.maximum(h @ params["W1"].T + params["b1"], 0.0)
    y = h @ params["W2"].T + params["b2"]
    if activation == "sigmoid":
        y = jax.nn.sigmoid(y)
    return y


if __name__ == "__main__":
    # Config implied by the module: MLP(input_size=16, hidden_sizes=[32, 32],
    # output_size=1, activation='sigmoid'), dropout_rate=0.5, batch=8.
    key = jax.random.PRNGKey(0)
    k_x, k_p = jax.random.split(key)

    B, INPUT, HIDDEN, OUT = 8, 16, [32, 32], 1
    x = jax.random.normal(k_x, (B, INPUT), jnp.float32)
    params = _init_params(k_p, INPUT, HIDDEN, OUT)
    prepared = prepare_params(params)

    # 1) p = 0 path must match a pure-JAX reference of the MLP exactly (no dropout).
    y0 = dropout_input_mlp(x, prepared, dropout_rate=0.0, activation="sigmoid", seed=0)
    y0 = jax.block_until_ready(y0)
    y_ref = _ref_mlp_no_dropout(x, params, "sigmoid")
    assert y0.shape == (B, OUT), y0.shape
    assert bool(jnp.allclose(y0, y_ref, rtol=1e-4, atol=1e-4)), (y0, y_ref)

    # 2) training-mode dropout path (p = 0.5).
    y = dropout_input_mlp(x, prepared, dropout_rate=0.5, activation="sigmoid", seed=1234)
    y = jax.block_until_ready(y)
    assert y.shape == (B, OUT), y.shape
    assert bool(jnp.all(jnp.isfinite(y)))
    assert bool(jnp.all((y > 0.0) & (y < 1.0)))   # sigmoid output in (0, 1)

    print("KERNEL_OK")
</pallas_src>

<mosaic_0001>
module attributes {stable_mosaic.version = 11 : i64} {
  func.func @_dropout_mlp_kernel(%arg0: i32, %arg1: memref<1xi32, #tpu.memory_space<smem>>, %arg2: memref<8x16xf32, #tpu.memory_space<vmem>>, %arg3: memref<16x32xf32, #tpu.memory_space<vmem>>, %arg4: memref<1x32xf32, #tpu.memory_space<vmem>>, %arg5: memref<32x32xf32, #tpu.memory_space<vmem>>, %arg6: memref<1x32xf32, #tpu.memory_space<vmem>>, %arg7: memref<1x32xf32, #tpu.memory_space<vmem>>, %arg8: memref<1x1xf32, #tpu.memory_space<vmem>>, %arg9: memref<1x8xf32, #tpu.memory_space<vmem>>) attributes {dimension_semantics = [#tpu.dimension_semantics<parallel>], iteration_bounds = array<i64: 1>, scalar_prefetch = 1 : i64, scratch_operands = 0 : i64, tpu.core_type = #tpu.core_type<tc>, window_params = [{transform_indices = @transform_0, window_bounds = array<i64: 8, 16>}, {pipeline_mode = #tpu.pipeline_mode<synchronous>, transform_indices = @transform_1, window_bounds = array<i64: 16, 32>}, {pipeline_mode = #tpu.pipeline_mode<synchronous>, transform_indices = @transform_2, window_bounds = array<i64: 1, 32>}, {pipeline_mode = #tpu.pipeline_mode<synchronous>, transform_indices = @transform_3, window_bounds = array<i64: 32, 32>}, {pipeline_mode = #tpu.pipeline_mode<synchronous>, transform_indices = @transform_4, window_bounds = array<i64: 1, 32>}, {pipeline_mode = #tpu.pipeline_mode<synchronous>, transform_indices = @transform_5, window_bounds = array<i64: 1, 32>}, {pipeline_mode = #tpu.pipeline_mode<synchronous>, transform_indices = @transform_6, window_bounds = array<i64: 1, 1>}, {transform_indices = @transform_7, window_bounds = array<i64: 1, 8>}]} {
    %c0 = arith.constant 0 : index
    %c0_0 = arith.constant 0 : index
    %0 = vector.load %arg2[%c0, %c0_0] : memref<8x16xf32, #tpu.memory_space<vmem>>, vector<8x16xf32>
    %c0_1 = arith.constant 0 : index
    %c0_2 = arith.constant 0 : index
    %1 = vector.load %arg3[%c0_1, %c0_2] : memref<16x32xf32, #tpu.memory_space<vmem>>, vector<16x32xf32>
    %cst = arith.constant dense<0.000000e+00> : vector<8x32xf32>
    %2 = tpu.matmul %0, %1, %cst {dimension_numbers = #tpu.dot_dimension_numbers<[1], [0], [0], [1], [0, 0, 1, 1], [], []>} : vector<8x16xf32>, vector<16x32xf32>, vector<8x32xf32> -> vector<8x32xf32>
    %c0_3 = arith.constant 0 : index
    %c0_4 = arith.constant 0 : index
    %3 = vector.load %arg4[%c0_3, %c0_4] : memref<1x32xf32, #tpu.memory_space<vmem>>, vector<1x32xf32>
    %4 = vector.broadcast %3 : vector<1x32xf32> to vector<8x32xf32>
    %5 = arith.addf %2, %4 : vector<8x32xf32>
    %cst_5 = arith.constant 0.000000e+00 : f32
    %6 = vector.broadcast %cst_5 : f32 to vector<8x32xf32>
    %7 = arith.maximumf %5, %6 : vector<8x32xf32>
    %c0_6 = arith.constant 0 : index
    %c0_7 = arith.constant 0 : index
    %8 = vector.load %arg5[%c0_6, %c0_7] : memref<32x32xf32, #tpu.memory_space<vmem>>, vector<32x32xf32>
    %cst_8 = arith.constant dense<0.000000e+00> : vector<8x32xf32>
    %9 = tpu.matmul %7, %8, %cst_8 {dimension_numbers = #tpu.dot_dimension_numbers<[1], [0], [0], [1], [0, 0, 1, 1], [], []>} : vector<8x32xf32>, vector<32x32xf32>, vector<8x32xf32> -> vector<8x32xf32>
    %c0_9 = arith.constant 0 : index
    %c0_10 = arith.constant 0 : index
    %10 = vector.load %arg6[%c0_9, %c0_10] : memref<1x32xf32, #tpu.memory_space<vmem>>, vector<1x32xf32>
    %11 = vector.broadcast %10 : vector<1x32xf32> to vector<8x32xf32>
    %12 = arith.addf %9, %11 : vector<8x32xf32>
    %cst_11 = arith.constant 0.000000e+00 : f32
    %13 = vector.broadcast %cst_11 : f32 to vector<8x32xf32>
    %14 = arith.maximumf %12, %13 : vector<8x32xf32>
    %c0_12 = arith.constant 0 : index
    %c0_13 = arith.constant 0 : index
    %15 = vector.load %arg7[%c0_12, %c0_13] : memref<1x32xf32, #tpu.memory_space<vmem>>, vector<1x32xf32>
    %cst_14 = arith.constant dense<0.000000e+00> : vector<1x8xf32>
    %16 = tpu.matmul %15, %14, %cst_14 {dimension_numbers = #tpu.dot_dimension_numbers<[1], [1], [0], [0], [0, 0, 1, 0], [], []>} : vector<1x32xf32>, vector<8x32xf32>, vector<1x8xf32> -> vector<1x8xf32>
    %c0_15 = arith.constant 0 : index
    %c0_16 = arith.constant 0 : index
    %17 = vector.load %arg8[%c0_15, %c0_16] : memref<1x1xf32, #tpu.memory_space<vmem>>, vector<1x1xf32>
    %18 = vector.broadcast %17 : vector<1x1xf32> to vector<1x8xf32>
    %19 = arith.addf %16, %18 : vector<1x8xf32>
    %20 = arith.negf %19 : vector<1x8xf32>
    %21 = math.exp %20 : vector<1x8xf32>
    %cst_17 = arith.constant 1.000000e+00 : f32
    %22 = vector.broadcast %cst_17 : f32 to vector<1x8xf32>
    %23 = arith.addf %22, %21 : vector<1x8xf32>
    %24 = arith.divf %22, %23 : vector<1x8xf32>
    %c0_18 = arith.constant 0 : index
    %c0_19 = arith.constant 0 : index
    %25 = vector.load %arg9[%c0_18, %c0_19] : memref<1x8xf32, #tpu.memory_space<vmem>>, vector<1x8xf32>
    tpu.vector_store %arg9[%c0_18, %c0_19], %24 {strides = array<i32>} : memref<1x8xf32, #tpu.memory_space<vmem>>, vector<1x8xf32>,
    return
  }
  func.func @transform_0(%arg0: i32, %arg1: memref<1xi32, #tpu.memory_space<smem>>) -> (i32, i32) {
    %c0_i32 = arith.constant 0 : i32
    %c0_i32_0 = arith.constant 0 : i32
    return %arg0, %c0_i32 : i32, i32
  }
  func.func @transform_1(%arg0: i32, %arg1: memref<1xi32, #tpu.memory_space<smem>>) -> (i32, i32) {
    %c0_i32 = arith.constant 0 : i32
    %c0_i32_0 = arith.constant 0 : i32
    %c0_i32_1 = arith.constant 0 : i32
    return %c0_i32, %c0_i32_0 : i32, i32
  }
  func.func @transform_2(%arg0: i32, %arg1: memref<1xi32, #tpu.memory_space<smem>>) -> (i32, i32) {
    %c0_i32 = arith.constant 0 : i32
    %c0_i32_0 = arith.constant 0 : i32
    %c0_i32_1 = arith.constant 0 : i32
    return %c0_i32, %c0_i32_0 : i32, i32
  }
  func.func @transform_3(%arg0: i32, %arg1: memref<1xi32, #tpu.memory_space<smem>>) -> (i32, i32) {
    %c0_i32 = arith.constant 0 : i32
    %c0_i32_0 = arith.constant 0 : i32
    %c0_i32_1 = arith.constant 0 : i32
    return %c0_i32, %c0_i32_0 : i32, i32
  }
  func.func @transform_4(%arg0: i32, %arg1: memref<1xi32, #tpu.memory_space<smem>>) -> (i32, i32) {
    %c0_i32 = arith.constant 0 : i32
    %c0_i32_0 = arith.constant 0 : i32
    %c0_i32_1 = arith.constant 0 : i32
    return %c0_i32, %c0_i32_0 : i32, i32
  }
  func.func @transform_5(%arg0: i32, %arg1: memref<1xi32, #tpu.memory_space<smem>>) -> (i32, i32) {
    %c0_i32 = arith.constant 0 : i32
    %c0_i32_0 = arith.constant 0 : i32
    %c0_i32_1 = arith.constant 0 : i32
    return %c0_i32, %c0_i32_0 : i32, i32
  }
  func.func @transform_6(%arg0: i32, %arg1: memref<1xi32, #tpu.memory_space<smem>>) -> (i32, i32) {
    %c0_i32 = arith.constant 0 : i32
    %c0_i32_0 = arith.constant 0 : i32
    %c0_i32_1 = arith.constant 0 : i32
    return %c0_i32, %c0_i32_0 : i32, i32
  }
  func.func @transform_7(%arg0: i32, %arg1: memref<1xi32, #tpu.memory_space<smem>>) -> (i32, i32) {
    %c0_i32 = arith.constant 0 : i32
    %c0_i32_0 = arith.constant 0 : i32
    return %c0_i32, %arg0 : i32, i32
  }
}

</mosaic_0001>

<llo_original>
// kernel: tpu_custom_call.1
$region0: #{tpu_custom_call.1}
  #allocation0 [shape = 'u32[]', space=smem, size = 0x4, offset = 0x4, fixed_abs, tag = 'smem constant byte address 0x4 - core index']
  #allocation1 [shape = 'u32[72,128]{1,0:T(1,128)}', space=vmem, size = 0x9000, scoped, tag = 'internal scratch']
  #allocation2 [shape = 's32[1]{0}', space=sflag, size = 0x4, scoped, tag = 'scoped memory for tpu_custom_call.1']
  #allocation3 [shape = 's32[1]{0:T(128)S(6)}', space=smem, size = 0x200, scoped, tag = 'prefetched SMEM operand 0']
  #allocation4 [shape = 'f32[1,1]{1,0:T(1,128)S(1)}', space=vmem, size = 0x200, scoped, tag = 'scoped memory for tpu_custom_call.1']
  %s0 = inlined_call_operand.<no memory space> [shape: s32[1], index: 0, kind: input, shape index: {}]
  %s1 = inlined_call_operand.hbm [shape: f32[8,16], index: 1, kind: input, shape index: {}]
  %s2 = inlined_call_operand.hbm [shape: f32[16,32], index: 2, kind: input, shape index: {}]
  %s3 = inlined_call_operand.vmem [shape: f32[1,32], index: 3, kind: input, shape index: {}]
  %s4 = inlined_call_operand.hbm [shape: f32[32,32], index: 4, kind: input, shape index: {}]
  %s5 = inlined_call_operand.vmem [shape: f32[1,32], index: 5, kind: input, shape index: {}]
  %s6 = inlined_call_operand.vmem [shape: f32[1,32], index: 6, kind: input, shape index: {}]
  %s7 = inlined_call_operand.<no memory space> [shape: f32[1,1], index: 7, kind: input, shape index: {}]
  %s8 = inlined_call_operand.hbm [shape: f32[1,8], index: 8, kind: output, shape index: {}]
  %s9 = sld [smem:[#allocation0]]
  $region50: #{tpu_custom_call.1} parent=0
    _
  %s11 = ssub.s32 1, %s9
  %s12 = scalar_select 0, %s11, %s9
  %13 = sst [smem:[#allocation3]] %s0
  %v14 = vstv %s7
  %15 = vst [vmem:[#allocation4] sm:$0x1] %v14
  $region1: #{tpu_custom_call.1} parent=0
    #allocation5 [shape = 'u8[4096]{0}', space=vmem, size = 0x1000, scoped, tag = 'input window, operand 1, single buffered']
    #allocation6 [shape = 's32[1]{0}', space=sflag, size = 0x4, scoped, tag = 'scoped memory for tpu_custom_call.1']
    #allocation7 [shape = 's32[1]{0}', space=sflag, size = 0x4, scoped, tag = 'scoped memory for tpu_custom_call.1']
    #allocation8 [shape = 'u8[8192]{0}', space=vmem, size = 0x2000, scoped, tag = 'input window, operand 2, single buffered']
    #allocation9 [shape = 's32[1]{0}', space=sflag, size = 0x4, scoped, tag = 'scoped memory for tpu_custom_call.1']
    #allocation10 [shape = 'u8[16384]{0}', space=vmem, size = 0x4000, scoped, tag = 'input window, operand 4, single buffered']
    #allocation11 [shape = 'u8[512]{0}', space=vmem, size = 0x400, scoped, tag = 'output window, operand 0, single buffered']
    %16 = vsyncpa [#allocation6], 0
    %17 = vsyncpa [#allocation9], 0
    %18 = vsyncpa [#allocation7], 0
    // Predicated region
    $region2: #{tpu_custom_call.1} parent=1 // pred_check
      _
    $region3: #{tpu_custom_call.1} parent=1 // pred_check_branch
      %20 = sbr.rel (0) target = $region5
    $region4: #{tpu_custom_call.1} parent=1 // pred_region
      %22 = vsyncadd [#allocation6], 0
      %s24 = sshll.u32 %s1, 4
      %s25 = int_to_ptr.hbm [resolvable:$true] %s24
      %s26 = sshll.u32 [#allocation5], 4
      %s27 = int_to_ptr.vmem [resolvable:$true] %s26
      %29 = dma.hbm_to_vmem [thread:$0]  %s25, 128, %s27, [#allocation6]
    $region5: #{tpu_custom_call.1} parent=1 // pred_fallthru
      _
    // Predicated region
    $region6: #{tpu_custom_call.1} parent=1 // pred_check
      _
    $region7: #{tpu_custom_call.1} parent=1 // pred_check_branch
      %31 = sbr.rel (0) target = $region9
    $region8: #{tpu_custom_call.1} parent=1 // pred_region
      %33 = vsyncadd [#allocation9], 0
      %s34 = sshll.u32 %s2, 4
      %s35 = int_to_ptr.hbm [resolvable:$true] %s34
      %s36 = sshll.u32 [#allocation8], 4
      %s37 = int_to_ptr.vmem [resolvable:$true] %s36
      %42 = dma.hbm_to_vmem [thread:$0]  %s35, 256, %s37, [#allocation9], 128, 128, 8
    $region9: #{tpu_custom_call.1} parent=1 // pred_fallthru
      _
    // Predicated region
    $region10: #{tpu_custom_call.1} parent=1 // pred_check
      _
    $region11: #{tpu_custom_call.1} parent=1 // pred_check_branch
      %44 = sbr.rel (0) target = $region13
    $region12: #{tpu_custom_call.1} parent=1 // pred_region
      _
    $region13: #{tpu_custom_call.1} parent=1 // pred_fallthru
      _
    // Predicated region
    $region14: #{tpu_custom_call.1} parent=1 // pred_check
      _
    $region15: #{tpu_custom_call.1} parent=1 // pred_check_branch
      %46 = sbr.rel (0) target = $region17
    $region16: #{tpu_custom_call.1} parent=1 // pred_region
      %48 = vsyncadd [#allocation9], 0
      %s49 = sshll.u32 %s4, 4
      %s50 = int_to_ptr.hbm [resolvable:$true] %s49
      %s51 = sshll.u32 [#allocation10], 4
      %s52 = int_to_ptr.vmem [resolvable:$true] %s51
      %57 = dma.hbm_to_vmem [thread:$0]  %s50, 512, %s52, [#allocation9], 128, 128, 8
    $region17: #{tpu_custom_call.1} parent=1 // pred_fallthru
      _
    // Predicated region
    $region18: #{tpu_custom_call.1} parent=1 // pred_check
      _
    $region19: #{tpu_custom_call.1} parent=1 // pred_check_branch
      %59 = sbr.rel (0) target = $region21
    $region20: #{tpu_custom_call.1} parent=1 // pred_region
      _
    $region21: #{tpu_custom_call.1} parent=1 // pred_fallthru
      _
    // Predicated region
    $region22: #{tpu_custom_call.1} parent=1 // pred_check
      _
    $region23: #{tpu_custom_call.1} parent=1 // pred_check_branch
      %61 = sbr.rel (0) target = $region25
    $region24: #{tpu_custom_call.1} parent=1 // pred_region
      _
    $region25: #{tpu_custom_call.1} parent=1 // pred_fallthru
      _
    // Predicated region
    $region26: #{tpu_custom_call.1} parent=1 // pred_check
      _
    $region27: #{tpu_custom_call.1} parent=1 // pred_check_branch
      %63 = sbr.rel (0) target = $region29
    $region28: #{tpu_custom_call.1} parent=1 // pred_region
      _
    $region29: #{tpu_custom_call.1} parent=1 // pred_fallthru
      _
    // Predicated region
    $region30: #{tpu_custom_call.1} parent=1 // pred_check
      _
    $region31: #{tpu_custom_call.1} parent=1 // pred_check_branch
      %65 = sbr.rel (0) target = $region33
    $region32: #{tpu_custom_call.1} parent=1 // pred_region
      %67 = dma.done [#allocation6], 128
    $region33: #{tpu_custom_call.1} parent=1 // pred_fallthru
      _
    // Predicated region
    $region34: #{tpu_custom_call.1} parent=1 // pred_check
      _
    $region35: #{tpu_custom_call.1} parent=1 // pred_check_branch
      %69 = sbr.rel (0) target = $region37
    $region36: #{tpu_custom_call.1} parent=1 // pred_region
      %71 = dma.done [#allocation9], 256
    $region37: #{tpu_custom_call.1} parent=1 // pred_fallthru
      _
    // Predicated region
    $region38: #{tpu_custom_call.1} parent=1 // pred_check
      _
    $region39: #{tpu_custom_call.1} parent=1 // pred_check_branch
      %73 = sbr.rel (0) target = $region41
    $region40: #{tpu_custom_call.1} parent=1 // pred_region
      %75 = dma.done [#allocation9], 512
    $region41: #{tpu_custom_call.1} parent=1 // pred_fallthru
      _
    %v76 = vld [vmem:[#allocation5] sm:$0xff]
    %v77 = vld [vmem:[#allocation8] sm:$0xff]
    %v78 = vld [vmem:[#allocation8 + $0x8] sm:$0xff]
    %v79 = vld [vmem:[%s3] sm:$0x1]
    %v81 = vperm.slane %v79, 0
    %vm83 = vcmask 130048
    %v85 = vsel %vm83, %v76, 0
    %87 = vmatpush.msra.mxu0 0.0
    %88 = vmatpush.msra.mxu0 0.0
    %89 = vmatpush.msra.mxu0 0.0
    %90 = vmatpush.msra.mxu0 0.0
    %91 = vmatpush.msra.mxu0 0.0
    %92 = vmatpush.msra.mxu0 0.0
    %93 = vmatpush.msra.mxu0 0.0
    %94 = vmatpush.msra.mxu0 0.0
    %95 = vmatpush.msra.mxu0 0.0
    %96 = vmatpush.msra.mxu0 0.0
    %97 = vmatpush.msra.mxu0 0.0
    %98 = vmatpush.msra.mxu0 0.0
    %99 = vmatpush.msra.mxu0 0.0
    %100 = vmatpush.msra.mxu0 0.0
    %101 = vmatpush.msra.mxu0 %v78
    %102 = vmatpush.msra.mxu0 %v77
    %103 = vmatmul.f32.gmra.mxu0 %v85
    %v104 = vpop.f32.mrf.mxu0
    %v105 = vadd.f32 %v81, %v104
    %106 = vdwg.mxu0
    %v107 = vmax.f32 %v105, 0.0
    %v108 = vld [vmem:[#allocation10] sm:$0xff]
    %v109 = vld [vmem:[#allocation10 + $0x8] sm:$0xff]
    %v110 = vld [vmem:[#allocation10 + $0x10] sm:$0xff]
    %v111 = vld [vmem:[#allocation10 + $0x18] sm:$0xff]
    %v112 = vld [vmem:[%s5] sm:$0x1]
    %v114 = vperm.slane %v112, 0
    %vm116 = vcmask 261120
    %v118 = vsel %vm116, %v107, 0
    %120 = vmatpush.msra.mxu0 0.0
    %121 = vmatpush.msra.mxu0 0.0
    %122 = vmatpush.msra.mxu0 0.0
    %123 = vmatpush.msra.mxu0 0.0
    %124 = vmatpush.msra.mxu0 0.0
    %125 = vmatpush.msra.mxu0 0.0
    %126 = vmatpush.msra.mxu0 0.0
    %127 = vmatpush.msra.mxu0 0.0
    %128 = vmatpush.msra.mxu0 0.0
    %129 = vmatpush.msra.mxu0 0.0
    %130 = vmatpush.msra.mxu0 0.0
    %131 = vmatpush.msra.mxu0 0.0
    %132 = vmatpush.msra.mxu0 %v111
    %133 = vmatpush.msra.mxu0 %v110
    %134 = vmatpush.msra.mxu0 %v109
    %135 = vmatpush.msra.mxu0 %v108
    %136 = vmatmul.f32.gmra.mxu0 %v118
    %v137 = vpop.f32.mrf.mxu0
    %v138 = vadd.f32 %v114, %v137
    %139 = vdwg.mxu0
    %v140 = vmax.f32 %v138, 0.0
    %v141 = vld [vmem:[%s6] sm:$0x1]
    %v142 = vld [vmem:[#allocation4] sm:$0x1]
    %144 = vset.pattern.permute.xlu0 0
    %145 = vperm.xlu0 %144, %v142
    %v146 = vpop.permute.xlu0 %145
    %v148 = vperm.slane %v146, 0
    %v150 = vsel %vm116, %v141, 0
    %v153 = vsel %vm116, %v140, 0
    %155 = vmatpush.xpose.msra.mxu0 0.0
    %156 = vmatpush.xpose.msra.mxu0 0.0
    %157 = vmatpush.xpose.msra.mxu0 0.0
    %158 = vmatpush.xpose.msra.mxu0 0.0
    %159 = vmatpush.xpose.msra.mxu0 0.0
    %160 = vmatpush.xpose.msra.mxu0 0.0
    %161 = vmatpush.xpose.msra.mxu0 0.0
    %162 = vmatpush.xpose.msra.mxu0 0.0
    %163 = vmatpush.xpose.msra.mxu0 0.0
    %164 = vmatpush.xpose.msra.mxu0 0.0
    %165 = vmatpush.xpose.msra.mxu0 0.0
    %166 = vmatpush.xpose.msra.mxu0 0.0
    %167 = vmatpush.xpose.msra.mxu0 0.0
    %168 = vmatpush.xpose.msra.mxu0 0.0
    %169 = vmatpush.xpose.msra.mxu0 0.0
    %170 = vmatpush.xpose.msra.mxu0 %v153
    %171 = vmatmul.f32.gmra.mxu0 %v150
    %v172 = vpop.f32.mrf.mxu0
    %v173 = vadd.f32 %v148, %v172
    %174 = vdwg.mxu0
    %v175 = vxor.u32 %v173, 2147483648
    %v176 = vmul.f32 %v175, 1.442695
    %v177 = vpow.pop %v176
    %v178 = vadd.f32 %v177, 1.0
    %v179 = vrcp.pop %v178
    %v180 = vmul.f32 %v178, %v179
    %v181 = vsub.f32 1.0, %v180
    %v182 = vmul.f32 %v179, %v181
    %v183 = vadd.f32 %v179, %v182
    %vm184 = vweird.f32 %v178
    %vm185 = vweird.f32 %v179
    %vm186 = vmor %vm184, %vm185
    %v187 = vsel %vm186, %v179, %v183
    %v188 = vand.u32 2147483647, %v178
    %vm189 = vcmp.eq.f32.partialorder %v188, 8.507059e+37
    %v190 = vand.u32 %v178, 2147483648
    %v191 = vor.u32 1.1754944e-38, %v190
    %v192 = vsel %vm189, %v191, %v187
    %v193 = vmul.f32 1.0, %v192
    %vm194 = vcmask 57344
    %195 = vst.msk [vmem:[#allocation11] sm:$0x1] %vm194, %v193
    // Predicated region
    $region42: #{tpu_custom_call.1} parent=1 // pred_check
      _
    $region43: #{tpu_custom_call.1} parent=1 // pred_check_branch
      %197 = sbr.rel (0) target = $region45
    $region44: #{tpu_custom_call.1} parent=1 // pred_region
      %199 = vsyncadd [#allocation7], 0
      %s201 = sshll.u32 [#allocation11], 4
      %s202 = int_to_ptr.vmem [resolvable:$true] %s201
      %s203 = sshll.u32 %s8, 4
      %s204 = int_to_ptr.hbm [resolvable:$true] %s203
      %206 = dma.vmem_to_hbm [thread:$0]  %s202, 16, %s204, [#allocation7]
    $region45: #{tpu_custom_call.1} parent=1 // pred_fallthru
      _
    // Predicated region
    $region46: #{tpu_custom_call.1} parent=1 // pred_check
      _
    $region47: #{tpu_custom_call.1} parent=1 // pred_check_branch
      %208 = sbr.rel (0) target = $region49
    $region48: #{tpu_custom_call.1} parent=1 // pred_region
      %210 = dma.done [#allocation7], 16
    $region49: #{tpu_custom_call.1} parent=1 // pred_fallthru
      _
    %211 = vsyncpa [#allocation6], 1
    %212 = vsyncpa [#allocation9], 1
    %213 = vsyncpa [#allocation7], 1

</llo_original>
